<compile_context>
chip_gen: v7x
topology: tpu7x:2x2x1
jax: 0.10.0
libtpu: 0.0.40
codegen_flags: <defaults>
</compile_context>

<pallas_src>
import math

import jax
import jax.numpy as jnp
from jax.experimental import pallas as pl
from jax.experimental.pallas import tpu as pltpu


def _round_up(x, m):
    return (x + m - 1) // m * m


def _vmem_limit_bytes():
    # ~3/4 of physical VMEM (128 MiB on v5e/v6e, 64 MiB on v7x), safe fallback.
    try:
        cap = getattr(pltpu.get_tpu_info(), "vmem_capacity_bytes", None)
        if cap:
            return int(cap * 3 // 4)
    except Exception:
        pass
    return 48 * 1024 * 1024


# ----------------------------------------------------------------------------
# Kernels.  grid = (N_tiles, O_tiles, H_tiles); H is the reduction axis.
#   per step:  h_j = relu(x_tile @ W1[:, j] + b1[j])          (tn, th)  f32
#              out[i, o] += h_j.bf16 @ W2[j, o]               (tn, to)  f32
#   j == 0:    out[i, o] initialized to broadcast(b2[o])  (no epilogue add)
# ----------------------------------------------------------------------------
def _ffn_kernel_inplace(x_ref, w1_ref, b1_ref, w2_ref, b2_ref, o_ref):
    """f32 output: accumulate directly in the resident output block."""
    j = pl.program_id(2)

    @pl.when(j == 0)
    def _():
        o_ref[...] = jnp.broadcast_to(b2_ref[...], o_ref.shape)

    h = jnp.dot(x_ref[...], w1_ref[...], preferred_element_type=jnp.float32)
    h = jnp.maximum(h + b1_ref[...], 0.0)
    # TODO(synk): F.dropout(h, self.dropout, self.training) skipped
    #             (module default dropout=0.0 / eval-mode semantics).
    o_ref[...] += jnp.dot(h.astype(jnp.bfloat16), w2_ref[...],
                          preferred_element_type=jnp.float32)


def _ffn_kernel_scratch(x_ref, w1_ref, b1_ref, w2_ref, b2_ref, o_ref, acc_ref):
    """Non-f32 output (e.g. bf16): keep a small f32 accumulator per O tile."""
    j = pl.program_id(2)

    @pl.when(j == 0)
    def _():
        acc_ref[...] = jnp.broadcast_to(b2_ref[...], acc_ref.shape)

    h = jnp.dot(x_ref[...], w1_ref[...], preferred_element_type=jnp.float32)
    h = jnp.maximum(h + b1_ref[...], 0.0)
    acc_ref[...] += jnp.dot(h.astype(jnp.bfloat16), w2_ref[...],
                            preferred_element_type=jnp.float32)

    @pl.when(j == pl.num_programs(2) - 1)
    def _():
        o_ref[...] = acc_ref[...].astype(o_ref.dtype)


# ----------------------------------------------------------------------------
# Tile planning (independent of N so padded weights can be cached).
# ----------------------------------------------------------------------------
def _plan_tiles(I, H, O, out_dtype, *, tn_target=512, th_target=512,
                vmem_budget=None):
    Ip = _round_up(I, 128)
    Hp = _round_up(H, 128)
    Op = _round_up(O, 128)
    out_bytes = jnp.dtype(out_dtype).itemsize
    budget = (vmem_budget if vmem_budget is not None
              else int(_vmem_limit_bytes() * 0.9))

    tn = tn_target
    th = min(th_target, Hp)
    to = Op

    def footprint(tn, th, to):
        # Double-buffered pipelined blocks: bf16 x/W1/W2, f32 biases.
        ins = tn * Ip * 2 + Ip * th * 2 + th * to * 2 + (th + to) * 4
        out = tn * to * out_bytes
        acc = tn * to * 4 if out_bytes != 4 else 0
        return 2 * ins + 2 * out + acc

    # 1) split O first: decouples VMEM (W2 tile + out block) from d_model.
    #    (Splitting O recomputes the first matmul per O tile, so only do it
    #     when the budget forces it.)
    while footprint(tn, th, to) > budget and to > 1024:
        to = _round_up(max(to // 2, 1024), 128)
    # 2) then shrink the H reduction tile.
    while footprint(tn, th, to) > budget and th > 256:
        th = _round_up(max(th // 2, 256), 128)
    # 3) finally shrink the row tile.
    while footprint(tn, th, to) > budget and tn > 64:
        tn = max(tn // 2, 64)

    Hp = _round_up(Hp, th)
    Op = _round_up(Op, to)
    return dict(I=I, H=H, O=O, Ip=Ip, Hp=Hp, Op=Op,
                tn_max=tn, th=th, to=to)


def _pad2d(a, shape, dtype):
    a = a.astype(dtype)
    if a.shape == shape:
        return a                       # aligned: no zero-fill copy needed
    return jnp.zeros(shape, dtype).at[: a.shape[0], : a.shape[1]].set(a)


def prepare_feed_forward(w1, b1, w2, b2, *, out_dtype=jnp.float32,
                         tn_target=512, th_target=512, vmem_budget=None):
    """Cast/pad weights once (cache this across calls)."""
    I, H = w1.shape
    O = w2.shape[1]
    plan = _plan_tiles(I, H, O, out_dtype, tn_target=tn_target,
                       th_target=th_target, vmem_budget=vmem_budget)
    return dict(
        plan=plan,
        out_dtype=out_dtype,
        w1=_pad2d(w1, (plan["Ip"], plan["Hp"]), jnp.bfloat16),
        b1=_pad2d(b1.reshape(1, -1), (1, plan["Hp"]), jnp.float32),
        w2=_pad2d(w2, (plan["Hp"], plan["Op"]), jnp.bfloat16),
        b2=_pad2d(b2.reshape(1, -1), (1, plan["Op"]), jnp.float32),
    )


def feed_forward_apply(params, x):
    """x: (..., I) -> (..., O) in params['out_dtype']."""
    plan = params["plan"]
    I, O = plan["I"], plan["O"]
    Ip, Hp, Op = plan["Ip"], plan["Hp"], plan["Op"]
    th, to = plan["th"], plan["to"]
    out_dtype = params["out_dtype"]

    lead = x.shape[:-1]
    N = 1
    for d in lead:
        N *= d
    x2d = x.reshape(N, I)

    tn = min(plan["tn_max"], _round_up(N, 8))
    # Megacore (v7x: 2 TCs/chip): keep >= 2 steps on the parallel axes.
    if (Op // to) == 1 and N > 8 and _round_up(N, tn) // tn < 2:
        tn = _round_up((N + 1) // 2, 8)
    Np = _round_up(N, tn)

    xb = _pad2d(x2d, (Np, Ip), jnp.bfloat16)

    grid = (Np // tn, Op // to, Hp // th)

    if jnp.dtype(out_dtype) == jnp.dtype(jnp.float32):
        kernel = _ffn_kernel_inplace
        scratch = []
    else:
        kernel = _ffn_kernel_scratch
        scratch = [pltpu.VMEM((tn, to), jnp.float32)]

    out = pl.pallas_call(
        kernel,
        out_shape=jax.ShapeDtypeStruct((Np, Op), out_dtype),
        grid_spec=pltpu.PrefetchScalarGridSpec(
            num_scalar_prefetch=0,
            grid=grid,
            in_specs=[
                pl.BlockSpec((tn, Ip), lambda i, o, j: (i, 0)),   # x row tile
                pl.BlockSpec((Ip, th), lambda i, o, j: (0, j)),   # W1 col tile
                pl.BlockSpec((1, th), lambda i, o, j: (0, j)),    # b1 tile
                pl.BlockSpec((th, to), lambda i, o, j: (j, o)),   # W2 tile
                pl.BlockSpec((1, to), lambda i, o, j: (0, o)),    # b2 tile
            ],
            out_specs=pl.BlockSpec((tn, to), lambda i, o, j: (i, o)),
            scratch_shapes=scratch,
        ),
        compiler_params=pltpu.CompilerParams(
            dimension_semantics=("parallel", "parallel", "arbitrary"),
            vmem_limit_bytes=_vmem_limit_bytes(),
        ),
    )(xb, params["w1"], params["b1"], params["w2"], params["b2"])

    return out[:N, :O].reshape(*lead, O)


def feed_forward(x, w1, b1, w2, b2, *, out_dtype=jnp.float32):
    """Convenience one-shot wrapper (prefer prepare + apply in hot paths)."""
    return feed_forward_apply(
        prepare_feed_forward(w1, b1, w2, b2, out_dtype=out_dtype), x)


# ----------------------------------------------------------------------------
# Pure-JAX references for validation.
# ----------------------------------------------------------------------------
def feed_forward_ref_f32(x, w1, b1, w2, b2):
    h = jax.nn.relu(x @ w1 + b1)
    return h @ w2 + b2


def feed_forward_ref_bf16(x, w1, b1, w2, b2):
    # Matches the kernel's mixed-precision recipe (bf16 MXU inputs, f32 accum).
    B, L, I = x.shape
    xb = x.reshape(B * L, I).astype(jnp.bfloat16)
    h = jnp.dot(xb, w1.astype(jnp.bfloat16), preferred_element_type=jnp.float32)
    h = jnp.maximum(h + b1, 0.0)
    y = jnp.dot(h.astype(jnp.bfloat16), w2.astype(jnp.bfloat16),
                preferred_element_type=jnp.float32) + b2
    return y.reshape(B, L, w2.shape[1])


if __name__ == "__main__":
    batch, seq = 2, 8
    input_size, hidden_size, output_size = 32, 64, 32

    key = jax.random.PRNGKey(0)
    ks = jax.random.split(key, 3)

    def xavier_uniform(k, shape):
        fan_in, fan_out = shape[-2], shape[-1]
        bound = math.sqrt(6.0 / (fan_in + fan_out))
        return jax.random.uniform(k, shape, jnp.float32, -bound, bound)

    # Parameters per FeedForward.reset_parameters (xavier weights, zero bias).
    w1 = xavier_uniform(ks[0], (input_size, hidden_size))
    b1 = jnp.zeros((hidden_size,), jnp.float32)
    w2 = xavier_uniform(ks[1], (hidden_size, output_size))
    b2 = jnp.zeros((output_size,), jnp.float32)

    x = jax.random.normal(ks[2], (batch, seq, input_size), jnp.float32)

    # Prepared (cached) weights + f32-output path (accumulates in o_ref).
    params_f32 = prepare_feed_forward(w1, b1, w2, b2, out_dtype=jnp.float32)
    out = jax.block_until_ready(feed_forward_apply(params_f32, x))
    assert out.shape == (batch, seq, output_size)

    ref_bf16 = feed_forward_ref_bf16(x, w1, b1, w2, b2)
    assert jnp.allclose(out, ref_bf16, atol=2e-3, rtol=2e-3), \
        "mismatch vs bf16-matched reference (f32 output path)"

    ref_f32 = feed_forward_ref_f32(x, w1, b1, w2, b2)
    assert jnp.allclose(out, ref_f32, atol=5e-2, rtol=5e-2), \
        "mismatch vs f32 reference (f32 output path)"

    # Optional bf16-output path (f32 scratch accumulator, halved writeback).
    params_bf16 = prepare_feed_forward(w1, b1, w2, b2, out_dtype=jnp.bfloat16)
    out_bf16 = jax.block_until_ready(feed_forward_apply(params_bf16, x))
    assert out_bf16.dtype == jnp.bfloat16
    assert jnp.allclose(out_bf16.astype(jnp.float32), ref_bf16,
                        atol=3e-2, rtol=3e-2), \
        "mismatch vs bf16-matched reference (bf16 output path)"

    print("KERNEL_OK")
</pallas_src>

<mosaic_0001>
module attributes {stable_mosaic.version = 11 : i64} {
  func.func @_ffn_kernel_inplace(%arg0: i32, %arg1: i32, %arg2: i32, %arg3: memref<8x128xbf16, #tpu.memory_space<vmem>>, %arg4: memref<128x128xbf16, #tpu.memory_space<vmem>>, %arg5: memref<1x128xf32, #tpu.memory_space<vmem>>, %arg6: memref<128x128xbf16, #tpu.memory_space<vmem>>, %arg7: memref<1x128xf32, #tpu.memory_space<vmem>>, %arg8: memref<8x128xf32, #tpu.memory_space<vmem>>) attributes {dimension_semantics = [#tpu.dimension_semantics<parallel>, #tpu.dimension_semantics<parallel>, #tpu.dimension_semantics<arbitrary>], iteration_bounds = array<i64: 2, 1, 1>, scalar_prefetch = 0 : i64, scratch_operands = 0 : i64, tpu.core_type = #tpu.core_type<tc>, window_params = [{transform_indices = @transform_0, window_bounds = array<i64: 8, 128>}, {transform_indices = @transform_1, window_bounds = array<i64: 128, 128>}, {transform_indices = @transform_2, window_bounds = array<i64: 1, 128>}, {transform_indices = @transform_3, window_bounds = array<i64: 128, 128>}, {transform_indices = @transform_4, window_bounds = array<i64: 1, 128>}, {transform_indices = @transform_5, window_bounds = array<i64: 8, 128>}]} {
    %c0_i32 = arith.constant 0 : i32
    %0 = arith.cmpi eq, %arg2, %c0_i32 : i32
    %1 = arith.extui %0 : i1 to i32
    %c0_i32_0 = arith.constant 0 : i32
    %2 = arith.cmpi ne, %1, %c0_i32_0 : i32
    scf.if %2 {
      %c0_14 = arith.constant 0 : index
      %c0_15 = arith.constant 0 : index
      %17 = vector.load %arg7[%c0_14, %c0_15] : memref<1x128xf32, #tpu.memory_space<vmem>>, vector<1x128xf32>
      %18 = vector.shape_cast %17 : vector<1x128xf32> to vector<1x128xf32>
      %19 = vector.broadcast %18 : vector<1x128xf32> to vector<8x128xf32>
      %c0_16 = arith.constant 0 : index
      %c0_17 = arith.constant 0 : index
      %20 = vector.load %arg8[%c0_16, %c0_17] : memref<8x128xf32, #tpu.memory_space<vmem>>, vector<8x128xf32>
      tpu.vector_store %arg8[%c0_16, %c0_17], %19 {strides = array<i32>} : memref<8x128xf32, #tpu.memory_space<vmem>>, vector<8x128xf32>,
    } else {
    }
    %c0 = arith.constant 0 : index
    %c0_1 = arith.constant 0 : index
    %3 = vector.load %arg3[%c0, %c0_1] : memref<8x128xbf16, #tpu.memory_space<vmem>>, vector<8x128xbf16>
    %c0_2 = arith.constant 0 : index
    %c0_3 = arith.constant 0 : index
    %4 = vector.load %arg4[%c0_2, %c0_3] : memref<128x128xbf16, #tpu.memory_space<vmem>>, vector<128x128xbf16>
    %cst = arith.constant dense<0.000000e+00> : vector<8x128xf32>
    %5 = tpu.matmul %3, %4, %cst {dimension_numbers = #tpu.dot_dimension_numbers<[1], [0], [0], [1], [0, 0, 1, 1], [], []>} : vector<8x128xbf16>, vector<128x128xbf16>, vector<8x128xf32> -> vector<8x128xf32>
    %c0_4 = arith.constant 0 : index
    %c0_5 = arith.constant 0 : index
    %6 = vector.load %arg5[%c0_4, %c0_5] : memref<1x128xf32, #tpu.memory_space<vmem>>, vector<1x128xf32>
    %7 = vector.broadcast %6 : vector<1x128xf32> to vector<8x128xf32>
    %8 = arith.addf %5, %7 : vector<8x128xf32>
    %cst_6 = arith.constant 0.000000e+00 : f32
    %9 = vector.broadcast %cst_6 : f32 to vector<8x128xf32>
    %10 = arith.maximumf %8, %9 : vector<8x128xf32>
    %c0_7 = arith.constant 0 : index
    %c0_8 = arith.constant 0 : index
    %11 = vector.load %arg8[%c0_7, %c0_8] : memref<8x128xf32, #tpu.memory_space<vmem>>, vector<8x128xf32>
    %12 = arith.truncf %10 : vector<8x128xf32> to vector<8x128xbf16>
    %c0_9 = arith.constant 0 : index
    %c0_10 = arith.constant 0 : index
    %13 = vector.load %arg6[%c0_9, %c0_10] : memref<128x128xbf16, #tpu.memory_space<vmem>>, vector<128x128xbf16>
    %cst_11 = arith.constant dense<0.000000e+00> : vector<8x128xf32>
    %14 = tpu.matmul %12, %13, %cst_11 {dimension_numbers = #tpu.dot_dimension_numbers<[1], [0], [0], [1], [0, 0, 1, 1], [], []>} : vector<8x128xbf16>, vector<128x128xbf16>, vector<8x128xf32> -> vector<8x128xf32>
    %15 = arith.addf %11, %14 : vector<8x128xf32>
    %c0_12 = arith.constant 0 : index
    %c0_13 = arith.constant 0 : index
    %16 = vector.load %arg8[%c0_12, %c0_13] : memref<8x128xf32, #tpu.memory_space<vmem>>, vector<8x128xf32>
    tpu.vector_store %arg8[%c0_12, %c0_13], %15 {strides = array<i32>} : memref<8x128xf32, #tpu.memory_space<vmem>>, vector<8x128xf32>,
    return
  }
  func.func @transform_0(%arg0: i32, %arg1: i32, %arg2: i32) -> (i32, i32) {
    %c0_i32 = arith.constant 0 : i32
    %c0_i32_0 = arith.constant 0 : i32
    return %arg0, %c0_i32 : i32, i32
  }
  func.func @transform_1(%arg0: i32, %arg1: i32, %arg2: i32) -> (i32, i32) {
    %c0_i32 = arith.constant 0 : i32
    %c0_i32_0 = arith.constant 0 : i32
    return %c0_i32, %arg2 : i32, i32
  }
  func.func @transform_2(%arg0: i32, %arg1: i32, %arg2: i32) -> (i32, i32) {
    %c0_i32 = arith.constant 0 : i32
    %c0_i32_0 = arith.constant 0 : i32
    return %c0_i32, %arg2 : i32, i32
  }
  func.func @transform_3(%arg0: i32, %arg1: i32, %arg2: i32) -> (i32, i32) {
    %c0_i32 = arith.constant 0 : i32
    return %arg2, %arg1 : i32, i32
  }
  func.func @transform_4(%arg0: i32, %arg1: i32, %arg2: i32) -> (i32, i32) {
    %c0_i32 = arith.constant 0 : i32
    %c0_i32_0 = arith.constant 0 : i32
    return %c0_i32, %arg1 : i32, i32
  }
  func.func @transform_5(%arg0: i32, %arg1: i32, %arg2: i32) -> (i32, i32) {
    %c0_i32 = arith.constant 0 : i32
    return %arg0, %arg1 : i32, i32
  }
}

</mosaic_0001>

<llo_original>
// kernel: tpu_custom_call.1
$region0: #{tpu_custom_call.1}
  #allocation0 [shape = 'u32[]', space=smem, size = 0x4, offset = 0x4, fixed_abs, tag = 'smem constant byte address 0x4 - core index']
  #allocation1 [shape = 'u32[144,128]{1,0:T(1,128)}', space=vmem, size = 0x12000, scoped, tag = 'internal scratch']
  %s0 = inlined_call_operand.hbm [shape: bf16[16,128], index: 0, kind: input, shape index: {}]
  %s1 = inlined_call_operand.hbm [shape: bf16[128,128], index: 1, kind: input, shape index: {}]
  %s2 = inlined_call_operand.vmem [shape: f32[1,128], index: 2, kind: input, shape index: {}]
  %s3 = inlined_call_operand.hbm [shape: bf16[128,128], index: 3, kind: input, shape index: {}]
  %s4 = inlined_call_operand.vmem [shape: f32[1,128], index: 4, kind: input, shape index: {}]
  %s5 = inlined_call_operand.hbm [shape: f32[16,128], index: 5, kind: output, shape index: {}]
  %s6 = sld [smem:[#allocation0]]
  $region69: #{tpu_custom_call.1} parent=0
    _
  %s8 = ssub.s32 1, %s6
  %s9 = scalar_select 0, %s8, %s6
  $region1: #{tpu_custom_call.1} parent=0
    #allocation2 [shape = 'u8[4096]{0}', space=vmem, size = 0x1000, scoped, tag = 'input window, operand 0']
    #allocation3 [shape = 's32[2]{0}', space=sflag, size = 0x8, scoped, tag = 'scoped memory for tpu_custom_call.1']
    #allocation4 [shape = 's32[2]{0}', space=sflag, size = 0x8, scoped, tag = 'scoped memory for tpu_custom_call.1']
    #allocation5 [shape = 'u8[32768]{0}', space=vmem, size = 0x8000, scoped, tag = 'input window, operand 1, single buffered']
    #allocation6 [shape = 's32[1]{0}', space=sflag, size = 0x4, scoped, tag = 'scoped memory for tpu_custom_call.1']
    #allocation7 [shape = 'u8[32768]{0}', space=vmem, size = 0x8000, scoped, tag = 'input window, operand 3, single buffered']
    #allocation8 [shape = 'u8[8192]{0}', space=vmem, size = 0x2000, scoped, tag = 'output window, operand 0']
    %10 = vsyncpa [#allocation3], 0
    %s11 = scalar_lea.sflag [#allocation3], 1
    %12 = vsyncpa %s11, 0
    %13 = vsyncpa [#allocation6], 0
    %14 = vsyncpa [#allocation4], 0
    %s15 = scalar_lea.sflag [#allocation4], 1
    %16 = vsyncpa %s15, 0
    loop: start=0, step=1, limit=4
    $region2: #{tpu_custom_call.1} parent=1 // loop_pre_header
      _
    $region3: #{tpu_custom_call.1} parent=1 // loop_header
      %s18 = sphi 0, %s22
      %p19 = scmp.ge.s32.totalorder %s18, 4
      %s25 = sphi 0, %s44
      %s26 = sphi 0, %s40
      %s27 = sphi 0, %s36
      %s28 = sphi 0, %s25
      %s29 = sphi 0, %s26
      %s30 = sphi 0, %s27
      %s31 = sphi 0, %s28
      %s32 = sphi 0, %s29
      %s33 = sphi 0, %s30
      %s47 = sphi 0, %s49
      %s50 = sphi 0, %s47
      %s51 = sphi 0, %s50
      %s67 = sphi 0, %s51
      %s73 = sphi 0, %s75
      %s76 = sphi 0, %s73
      %s77 = sphi 0, %s76
      %s93 = sphi 0, %s77
      %s99 = sphi 0, %s101
      %s102 = sphi 0, %s99
      %s103 = sphi 0, %s102
      %s119 = sphi 0, %s103
      %s127 = sphi 0, %s129
      %s130 = sphi 0, %s127
      %s131 = sphi 0, %s130
      %s147 = sphi 0, %s131
      %s153 = sphi 0, %s155
      %s156 = sphi 0, %s153
      %s157 = sphi 0, %s156
      %s173 = sphi 0, %s157
      %s181 = sphi 0, %s183
      %s184 = sphi 0, %s181
      %s185 = sphi 0, %s184
      %s201 = sphi 0, %s185
    $region4: #{tpu_custom_call.1} parent=1 // loop_header_branch
      %21 = sbr.rel (%p19) target = $region8
    $region5: #{tpu_custom_call.1} parent=1 // loop_body
      %s23 = ssub.s32 %s18, 1
      %s24 = ssub.s32 %s18, 2
      %s34 = sadd.s32 1, %s27
      %p35 = scmp.ge.s32.totalorder %s34, 1
      %s36 = scalar_select %p35, 0, %s34
      %s37 = sadd.s32 1, %s26
      %s38 = scalar_select %p35, %s37, %s26
      %p39 = scmp.ge.s32.totalorder %s38, 1
      %s40 = scalar_select %p39, 0, %s38
      %s41 = sadd.s32 1, %s25
      %s42 = scalar_select %p39, %s41, %s25
      %p43 = scmp.ge.s32.totalorder %s42, 2
      %s44 = scalar_select %p43, 0, %s42
      %s45 = ssub.s32 %s25, %s44
      %p46 = scmp.eq.s32.totalorder %s45, 0
      %s48 = sadd.s32 %s47, 1
      %s49 = scalar_select %p46, %s47, %s48
      %p52 = pneg %p46
      %p53 = scmp.eq.s32.totalorder %s18, 1
      %p54 = por %p52, %p53
      %p55 = scmp.ne.s32.totalorder %s47, %s50
      %p56 = scmp.eq.s32.totalorder %s18, 0
      %p57 = por %p55, %p56
      %p58 = scmp.ne.s32.totalorder %s47, %s50
      %p59 = scmp.eq.s32.totalorder %s23, 1
      %p60 = por %p58, %p59
      %p61 = scmp.ne.s32.totalorder %s50, %s51
      %p62 = scmp.eq.s32.totalorder %s23, 0
      %p63 = por %p61, %p62
      %p64 = scmp.ne.s32.totalorder %s50, %s51
      %p65 = scmp.eq.s32.totalorder %s24, 1
      %p66 = por %p64, %p65
      %p68 = scmp.ne.s32.totalorder %s51, %s67
      %p69 = scmp.eq.s32.totalorder %s24, 0
      %p70 = por %p68, %p69
      %s71 = ssub.s32 %s27, %s36
      %p72 = scmp.eq.s32.totalorder %s71, 0
      %s74 = sadd.s32 %s73, 1
      %s75 = scalar_select %p72, %s73, %s74
      %p78 = pneg %p72
      %p79 = scmp.eq.s32.totalorder %s18, 1
      %p80 = por %p78, %p79
      %p81 = scmp.ne.s32.totalorder %s73, %s76
      %p82 = scmp.eq.s32.totalorder %s18, 0
      %p83 = por %p81, %p82
      %p84 = scmp.ne.s32.totalorder %s73, %s76
      %p85 = scmp.eq.s32.totalorder %s23, 1
      %p86 = por %p84, %p85
      %p87 = scmp.ne.s32.totalorder %s76, %s77
      %p88 = scmp.eq.s32.totalorder %s23, 0
      %p89 = por %p87, %p88
      %p90 = scmp.ne.s32.totalorder %s76, %s77
      %p91 = scmp.eq.s32.totalorder %s24, 1
      %p92 = por %p90, %p91
      %p94 = scmp.ne.s32.totalorder %s77, %s93
      %p95 = scmp.eq.s32.totalorder %s24, 0
      %p96 = por %p94, %p95
      %s97 = ssub.s32 %s27, %s36
      %p98 = scmp.eq.s32.totalorder %s97, 0
      %s100 = sadd.s32 %s99, 1
      %s101 = scalar_select %p98, %s99, %s100
      %p104 = pneg %p98
      %p105 = scmp.eq.s32.totalorder %s18, 1
      %p106 = por %p104, %p105
      %p107 = scmp.ne.s32.totalorder %s99, %s102
      %p108 = scmp.eq.s32.totalorder %s18, 0
      %p109 = por %p107, %p108
      %p110 = scmp.ne.s32.totalorder %s99, %s102
      %p111 = scmp.eq.s32.totalorder %s23, 1
      %p112 = por %p110, %p111
      %p113 = scmp.ne.s32.totalorder %s102, %s103
      %p114 = scmp.eq.s32.totalorder %s23, 0
      %p115 = por %p113, %p114
      %p116 = scmp.ne.s32.totalorder %s102, %s103
      %p117 = scmp.eq.s32.totalorder %s24, 1
      %p118 = por %p116, %p117
      %p120 = scmp.ne.s32.totalorder %s103, %s119
      %p121 = scmp.eq.s32.totalorder %s24, 0
      %p122 = por %p120, %p121
      %s123 = ssub.s32 %s27, %s36
      %s124 = ssub.s32 %s26, %s40
      %s125 = sor.u32 %s123, %s124
      %p126 = scmp.eq.s32.totalorder %s125, 0
      %s128 = sadd.s32 %s127, 1
      %s129 = scalar_select %p126, %s127, %s128
      %p132 = pneg %p126
      %p133 = scmp.eq.s32.totalorder %s18, 1
      %p134 = por %p132, %p133
      %p135 = scmp.ne.s32.totalorder %s127, %s130
      %p136 = scmp.eq.s32.totalorder %s18, 0
      %p137 = por %p135, %p136
      %p138 = scmp.ne.s32.totalorder %s127, %s130
      %p139 = scmp.eq.s32.totalorder %s23, 1
      %p140 = por %p138, %p139
      %p141 = scmp.ne.s32.totalorder %s130, %s131
      %p142 = scmp.eq.s32.totalorder %s23, 0
      %p143 = por %p141, %p142
      %p144 = scmp.ne.s32.totalorder %s130, %s131
      %p145 = scmp.eq.s32.totalorder %s24, 1
      %p146 = por %p144, %p145
      %p148 = scmp.ne.s32.totalorder %s131, %s147
      %p149 = scmp.eq.s32.totalorder %s24, 0
      %p150 = por %p148, %p149
      %s151 = ssub.s32 %s26, %s40
      %p152 = scmp.eq.s32.totalorder %s151, 0
      %s154 = sadd.s32 %s153, 1
      %s155 = scalar_select %p152, %s153, %s154
      %p158 = pneg %p152
      %p159 = scmp.eq.s32.totalorder %s18, 1
      %p160 = por %p158, %p159
      %p161 = scmp.ne.s32.totalorder %s153, %s156
      %p162 = scmp.eq.s32.totalorder %s18, 0
      %p163 = por %p161, %p162
      %p164 = scmp.ne.s32.totalorder %s153, %s156
      %p165 = scmp.eq.s32.totalorder %s23, 1
      %p166 = por %p164, %p165
      %p167 = scmp.ne.s32.totalorder %s156, %s157
      %p168 = scmp.eq.s32.totalorder %s23, 0
      %p169 = por %p167, %p168
      %p170 = scmp.ne.s32.totalorder %s156, %s157
      %p171 = scmp.eq.s32.totalorder %s24, 1
      %p172 = por %p170, %p171
      %p174 = scmp.ne.s32.totalorder %s157, %s173
      %p175 = scmp.eq.s32.totalorder %s24, 0
      %p176 = por %p174, %p175
      %s177 = ssub.s32 %s25, %s44
      %s178 = ssub.s32 %s26, %s40
      %s179 = sor.u32 %s177, %s178
      %p180 = scmp.eq.s32.totalorder %s179, 0
      %s182 = sadd.s32 %s181, 1
      %s183 = scalar_select %p180, %s181, %s182
      %p186 = pneg %p180
      %p187 = scmp.eq.s32.totalorder %s18, 1
      %p188 = por %p186, %p187
      %p189 = scmp.ne.s32.totalorder %s181, %s184
      %p190 = scmp.eq.s32.totalorder %s18, 0
      %p191 = por %p189, %p190
      %p192 = scmp.ne.s32.totalorder %s181, %s184
      %p193 = scmp.eq.s32.totalorder %s23, 1
      %p194 = por %p192, %p193
      %p195 = scmp.ne.s32.totalorder %s184, %s185
      %p196 = scmp.eq.s32.totalorder %s23, 0
      %p197 = por %p195, %p196
      %p198 = scmp.ne.s32.totalorder %s184, %s185
      %p199 = scmp.eq.s32.totalorder %s24, 1
      %p200 = por %p198, %p199
      %p202 = scmp.ne.s32.totalorder %s185, %s201
      %p203 = scmp.eq.s32.totalorder %s24, 0
      %p204 = por %p202, %p203
      %p205 = scmp.le.s32.totalorder 1, %s18
      %p206 = scmp.lt.s32.totalorder %s18, 3
      %p207 = pnand %p205, %p206
      %p208 = pneg %p207
      // Predicated region
      $region9: #{tpu_custom_call.1} parent=5 // pred_check
        _
      $region10: #{tpu_custom_call.1} parent=5 // pred_check_branch
        %210 = sbr.rel (%p207) target = $region12
      $region11: #{tpu_custom_call.1} parent=5 // pred_region
        %s211 = ssub.s32 %s18, 1
        // Predicated region
        $region13: #{tpu_custom_call.1} parent=11 // pred_check
          %p212 = pneg %p89
        $region14: #{tpu_custom_call.1} parent=11 // pred_check_branch
          %214 = sbr.rel (%p212) target = $region16
        $region15: #{tpu_custom_call.1} parent=11 // pred_region
          %s216 = ssub.s32 1024, 1024
          %217 = vsyncadd [#allocation6], %s216
          %s218 = smul.addr %s30, 64
          %s219 = scalar_lea.hbm %s1, %s218
          %s220 = sshll.u32 [#allocation5], 4
          %s221 = int_to_ptr.vmem [resolvable:$true] %s220
          %226 = dma.hbm_to_vmem [thread:$0]  %s219, 1024, %s221, [#allocation6], 64, 64, 4
        $region16: #{tpu_custom_call.1} parent=11 // pred_fallthru
          _
        // Predicated region
        $region17: #{tpu_custom_call.1} parent=11 // pred_check
          %p227 = pneg %p115
        $region18: #{tpu_custom_call.1} parent=11 // pred_check_branch
          %229 = sbr.rel (%p227) target = $region20
        $region19: #{tpu_custom_call.1} parent=11 // pred_region
          %p230 = scmp.lt.s32.totalorder %s30, 0
          %s231 = scalar_select %p230, %s30, 0
          %s232 = scalar_lea.vmem %s2, %s231
        $region20: #{tpu_custom_call.1} parent=11 // pred_fallthru
          _
        // Predicated region
        $region21: #{tpu_custom_call.1} parent=11 // pred_check
          %p233 = pneg %p143
        $region22: #{tpu_custom_call.1} parent=11 // pred_check_branch
          %235 = sbr.rel (%p233) target = $region24
        $region23: #{tpu_custom_call.1} parent=11 // pred_region
          %s236 = smul.u32 16, %s30
          %s238 = ssub.s32 1024, 1024
          %239 = vsyncadd [#allocation6], %s238
          %s240 = sadd.s32 %s29, %s236
          %s241 = smul.addr %s240, 64
          %s242 = scalar_lea.hbm %s3, %s241
          %s243 = sshll.u32 [#allocation7], 4
          %s244 = int_to_ptr.vmem [resolvable:$true] %s243
          %249 = dma.hbm_to_vmem [thread:$0]  %s242, 1024, %s244, [#allocation6], 64, 64, 4
        $region24: #{tpu_custom_call.1} parent=11 // pred_fallthru
          _
        // Predicated region
        $region25: #{tpu_custom_call.1} parent=11 // pred_check
          %p250 = pneg %p169
        $region26: #{tpu_custom_call.1} parent=11 // pred_check_branch
          %252 = sbr.rel (%p250) target = $region28
        $region27: #{tpu_custom_call.1} parent=11 // pred_region
          %p253 = scmp.lt.s32.totalorder %s29, 0
          %s254 = scalar_select %p253, %s29, 0
          %s255 = scalar_lea.vmem %s4, %s254
        $region28: #{tpu_custom_call.1} parent=11 // pred_fallthru
          _
      $region12: #{tpu_custom_call.1} parent=5 // pred_fallthru
        _
      %p256 = scmp.lt.s32.totalorder %s18, 2
      // Predicated region
      $region29: #{tpu_custom_call.1} parent=5 // pred_check
        %p257 = pneg %p256
      $region30: #{tpu_custom_call.1} parent=5 // pred_check_branch
        %259 = sbr.rel (%p257) target = $region32
      $region31: #{tpu_custom_call.1} parent=5 // pred_region
        // Predicated region
        $region33: #{tpu_custom_call.1} parent=31 // pred_check
          %p260 = pneg %p57
        $region34: #{tpu_custom_call.1} parent=31 // pred_check_branch
          %262 = sbr.rel (%p260) target = $region36
        $region35: #{tpu_custom_call.1} parent=31 // pred_region
          %s263 = sand.u32 %s47, 1
          %s264 = scalar_lea.sflag [#allocation3], %s263
          %s265 = sand.u32 %s47, 1
          %s266 = smul.addr %s265, 4
          %s267 = scalar_lea.vmem [#allocation2], %s266
          %s269 = ssub.s32 64, 64
          %270 = vsyncadd %s264, %s269
          %s271 = smul.addr %s25, 64
          %s272 = scalar_lea.hbm %s0, %s271
          %s274 = sshll.u32 %s267, 4
          %s275 = int_to_ptr.vmem [resolvable:$true] %s274
          %277 = dma.hbm_to_vmem [thread:$0]  %s272, 64, %s275, %s264
        $region36: #{tpu_custom_call.1} parent=31 // pred_fallthru
          _
      $region32: #{tpu_custom_call.1} parent=5 // pred_fallthru
        _
      %p278 = scmp.le.s32.totalorder 1, %s18
      %p279 = scmp.lt.s32.totalorder %s18, 3
      %p280 = pnand %p278, %p279
      %p281 = pneg %p280
      // Predicated region
      $region37: #{tpu_custom_call.1} parent=5 // pred_check
        _
      $region38: #{tpu_custom_call.1} parent=5 // pred_check_branch
        %283 = sbr.rel (%p280) target = $region40
      $region39: #{tpu_custom_call.1} parent=5 // pred_region
        %s284 = ssub.s32 %s18, 1
        %s285 = sand.u32 %s50, 1
        %s286 = scalar_lea.sflag [#allocation3], %s285
        %s287 = sand.u32 %s50, 1
        %s288 = smul.addr %s287, 4
        %s289 = scalar_lea.vmem [#allocation2], %s288
        // Predicated region
        $region41: #{tpu_custom_call.1} parent=39 // pred_check
          %p290 = pneg %p63
        $region42: #{tpu_custom_call.1} parent=39 // pred_check_branch
          %292 = sbr.rel (%p290) target = $region44
        $region43: #{tpu_custom_call.1} parent=39 // pred_region
          %293 = dma.done %s286, 64
        $region44: #{tpu_custom_call.1} parent=39 // pred_fallthru
          _
        // Predicated region
        $region45: #{tpu_custom_call.1} parent=39 // pred_check
          %p294 = pneg %p89
        $region46: #{tpu_custom_call.1} parent=39 // pred_check_branch
          %296 = sbr.rel (%p294) target = $region48
        $region47: #{tpu_custom_call.1} parent=39 // pred_region
          %297 = dma.done [#allocation6], 1024
        $region48: #{tpu_custom_call.1} parent=39 // pred_fallthru
          _
        // Predicated region
        $region49: #{tpu_custom_call.1} parent=39 // pred_check
          %p298 = pneg %p143
        $region50: #{tpu_custom_call.1} parent=39 // pred_check_branch
          %300 = sbr.rel (%p298) target = $region52
        $region51: #{tpu_custom_call.1} parent=39 // pred_region
          %301 = dma.done [#allocation6], 1024
        $region52: #{tpu_custom_call.1} parent=39 // pred_fallthru
          _
        %s302 = sand.u32 %s50, 1
        %s303 = scalar_lea.sflag [#allocation3], %s302
        %s304 = sand.u32 %s50, 1
        %s305 = smul.addr %s304, 4
        %s306 = scalar_lea.vmem [#allocation2], %s305
        %p307 = pneg %p63
        %p308 = pneg %p60
        %p309 = pneg %p89
        %p310 = pneg %p86
        %p311 = scmp.lt.s32.totalorder %s30, 0
        %s312 = scalar_select %p311, %s30, 0
        %s313 = scalar_lea.vmem %s2, %s312
        %p314 = pneg %p115
        %p315 = pneg %p112
        %p316 = pneg %p143
        %p317 = pneg %p140
        %p318 = scmp.lt.s32.totalorder %s29, 0
        %s319 = scalar_select %p318, %s29, 0
        %s320 = scalar_lea.vmem %s4, %s319
        %p321 = pneg %p169
        %p322 = pneg %p166
        %p323 = pneg %p197
        %p324 = pneg %p194
        %s325 = sand.u32 %s184, 1
        %s326 = scalar_lea.sflag [#allocation4], %s325
        %s327 = sand.u32 %s184, 1
        %s328 = smul.addr %s327, 8
        %s329 = scalar_lea.vmem [#allocation8], %s328
        %p330 = scmp.lt.s32.totalorder %s30, 0
        %s331 = scalar_select %p330, %s30, 0
        %s332 = scalar_lea.vmem %s2, %s331
        %s333 = smul.u32 16, %s30
        %p334 = scmp.lt.s32.totalorder %s29, 0
        %s335 = scalar_select %p334, %s29, 0
        %s336 = scalar_lea.vmem %s4, %s335
        %p338 = scmp.eq.s32.totalorder %s30, 0
        // Predicated region
        $region53: #{tpu_custom_call.1} parent=39 // pred_check
          %p339 = pneg %p338
        $region54: #{tpu_custom_call.1} parent=39 // pred_check_branch
          %341 = sbr.rel (%p339) target = $region56
        $region55: #{tpu_custom_call.1} parent=39 // pred_region
          %v342 = vld [vmem:[%s336] sm:$0x1]
          %v344 = vlaneseq
          %v345 = vshrl.u32 %v344, 7
          %v346 = vsub.s32 0, %v345
          %v347 = vrot.slane %v342, %v346
          %349 = vst [vmem:[%s329] sm:$0xff] %v347
        $region56: #{tpu_custom_call.1} parent=39 // pred_fallthru
          _
        %v350 = vld [vmem:[%s289] sm:$0xf]
        %v351 = vld [vmem:[#allocation5] sm:$0xf]
        %v352 = vld [vmem:[#allocation5 + $0x4] sm:$0xf]
        %v353 = vld [vmem:[#allocation5 + $0x8] sm:$0xf]
        %v354 = vld [vmem:[#allocation5 + $0xc] sm:$0xf]
        %v355 = vld [vmem:[#allocation5 + $0x10] sm:$0xf]
        %v356 = vld [vmem:[#allocation5 + $0x14] sm:$0xf]
        %v357 = vld [vmem:[#allocation5 + $0x18] sm:$0xf]
        %v358 = vld [vmem:[#allocation5 + $0x1c] sm:$0xf]
        %v359 = vld [vmem:[#allocation5 + $0x20] sm:$0xf]
        %v360 = vld [vmem:[#allocation5 + $0x24] sm:$0xf]
        %v361 = vld [vmem:[#allocation5 + $0x28] sm:$0xf]
        %v362 = vld [vmem:[#allocation5 + $0x2c] sm:$0xf]
        %v363 = vld [vmem:[#allocation5 + $0x30] sm:$0xf]
        %v364 = vld [vmem:[#allocation5 + $0x34] sm:$0xf]
        %v365 = vld [vmem:[#allocation5 + $0x38] sm:$0xf]
        %v366 = vld [vmem:[#allocation5 + $0x3c] sm:$0xf]
        %v367 = vld [vmem:[%s332] sm:$0x1]
        %v369 = vlaneseq
        %v370 = vshrl.u32 %v369, 7
        %v371 = vsub.s32 0, %v370
        %v372 = vrot.slane %v367, %v371
        %v390 = vunpack.c.l.b16 %v351
        %v391 = vunpack.c.l.b16 %v352
        %v392 = vunpack.c.l.b16 %v353
        %v393 = vunpack.c.l.b16 %v354
        %v394 = vunpack.c.l.b16 %v355
        %v395 = vunpack.c.l.b16 %v356
        %v396 = vunpack.c.l.b16 %v357
        %v397 = vunpack.c.l.b16 %v358
        %v398 = vunpack.c.l.b16 %v359
        %v399 = vunpack.c.l.b16 %v360
        %v400 = vunpack.c.l.b16 %v361
        %v401 = vunpack.c.l.b16 %v362
        %v402 = vunpack.c.l.b16 %v363
        %v403 = vunpack.c.l.b16 %v364
        %v404 = vunpack.c.l.b16 %v365
        %v405 = vunpack.c.l.b16 %v366
        %v406 = vpack.c.b16 %v391, %v390
        %v407 = vpack.c.b16 %v393, %v392
        %v408 = vpack.c.b16 %v395, %v394
        %v409 = vpack.c.b16 %v397, %v396
        %v410 = vpack.c.b16 %v399, %v398
        %v411 = vpack.c.b16 %v401, %v400
        %v412 = vpack.c.b16 %v403, %v402
        %v413 = vpack.c.b16 %v405, %v404
        %422 = vmatprep.subr.bf16.mxu0 0
        %423 = vmatpush1.bf16.msra.mxu0 %v406
        %424 = vmatprep.subr.bf16.mxu0 0
        %425 = vmatpush1.bf16.msra.mxu0 %v407
        %426 = vmatprep.subr.bf16.mxu0 0
        %427 = vmatpush1.bf16.msra.mxu0 %v408
        %428 = vmatprep.subr.bf16.mxu0 0
        %429 = vmatpush1.bf16.msra.mxu0 %v409
        %430 = vmatprep.subr.bf16.mxu0 0
        %431 = vmatpush1.bf16.msra.mxu0 %v410
        %432 = vmatprep.subr.bf16.mxu0 0
        %433 = vmatpush1.bf16.msra.mxu0 %v411
        %434 = vmatprep.subr.bf16.mxu0 0
        %435 = vmatpush1.bf16.msra.mxu0 %v412
        %436 = vmatprep.subr.bf16.mxu0 0
        %437 = vmatpush1.bf16.msra.mxu0 %v413
        %438 = vmatprep.subr.bf16.mxu0 0
        %439 = vmatpush1.bf16.msra.mxu0 0
        %440 = vmatprep.subr.bf16.mxu0 0
        %441 = vmatpush1.bf16.msra.mxu0 0
        %442 = vmatprep.subr.bf16.mxu0 0
        %443 = vmatpush1.bf16.msra.mxu0 0
        %444 = vmatprep.subr.bf16.mxu0 0
        %445 = vmatpush1.bf16.msra.mxu0 0
        %446 = vmatprep.subr.bf16.mxu0 0
        %447 = vmatpush1.bf16.msra.mxu0 0
        %448 = vmatprep.subr.bf16.mxu0 0
        %449 = vmatpush1.bf16.msra.mxu0 0
        %450 = vmatprep.subr.bf16.mxu0 0
        %451 = vmatpush1.bf16.msra.mxu0 0
        %452 = vmatprep.subr.bf16.mxu0 0
        %453 = vmatpush1.bf16.msra.mxu0 0
        %454 = vmatprep.mubr.bf16.mxu0 0
        %455 = vmatmul.mubr.bf16.gmra.mrb[0].mxu0 %v350
        %v456 = vpop.f32.mrb[0].mxu0
        %v457 = vadd.f32 %v372, %v456
        %v458 = vpop.f32.mrb[0].mxu0
        %v459 = vpop.f32.mrb[0].mxu0
        %v460 = vpop.f32.mrb[0].mxu0
        %461 = vdwg.mxu0
        %v462 = vmax.f32 %v457, 0.0
        %v463 = vld [vmem:[%s329] sm:$0xff]
        %v464 = vpack.c.bf16 %v462, %v462
        %v465 = vld [vmem:[#allocation7] sm:$0xf]
        %v466 = vld [vmem:[#allocation7 + $0x4] sm:$0xf]
        %v467 = vld [vmem:[#allocation7 + $0x8] sm:$0xf]
        %v468 = vld [vmem:[#allocation7 + $0xc] sm:$0xf]
        %v469 = vld [vmem:[#allocation7 + $0x10] sm:$0xf]
        %v470 = vld [vmem:[#allocation7 + $0x14] sm:$0xf]
        %v471 = vld [vmem:[#allocation7 + $0x18] sm:$0xf]
        %v472 = vld [vmem:[#allocation7 + $0x1c] sm:$0xf]
        %v473 = vld [vmem:[#allocation7 + $0x20] sm:$0xf]
        %v474 = vld [vmem:[#allocation7 + $0x24] sm:$0xf]
        %v475 = vld [vmem:[#allocation7 + $0x28] sm:$0xf]
        %v476 = vld [vmem:[#allocation7 + $0x2c] sm:$0xf]
        %v477 = vld [vmem:[#allocation7 + $0x30] sm:$0xf]
        %v478 = vld [vmem:[#allocation7 + $0x34] sm:$0xf]
        %v479 = vld [vmem:[#allocation7 + $0x38] sm:$0xf]
        %v480 = vld [vmem:[#allocation7 + $0x3c] sm:$0xf]
        %v497 = vunpack.c.l.b16 %v465
        %v498 = vunpack.c.l.b16 %v466
        %v499 = vunpack.c.l.b16 %v467
        %v500 = vunpack.c.l.b16 %v468
        %v501 = vunpack.c.l.b16 %v469
        %v502 = vunpack.c.l.b16 %v470
        %v503 = vunpack.c.l.b16 %v471
        %v504 = vunpack.c.l.b16 %v472
        %v505 = vunpack.c.l.b16 %v473
        %v506 = vunpack.c.l.b16 %v474
        %v507 = vunpack.c.l.b16 %v475
        %v508 = vunpack.c.l.b16 %v476
        %v509 = vunpack.c.l.b16 %v477
        %v510 = vunpack.c.l.b16 %v478
        %v511 = vunpack.c.l.b16 %v479
        %v512 = vunpack.c.l.b16 %v480
        %v513 = vpack.c.b16 %v498, %v497
        %v514 = vpack.c.b16 %v500, %v499
        %v515 = vpack.c.b16 %v502, %v501
        %v516 = vpack.c.b16 %v504, %v503
        %v517 = vpack.c.b16 %v506, %v505
        %v518 = vpack.c.b16 %v508, %v507
        %v519 = vpack.c.b16 %v510, %v509
        %v520 = vpack.c.b16 %v512, %v511
        %529 = vmatprep.subr.bf16.mxu0 0
        %530 = vmatpush1.bf16.msra.mxu0 %v513
        %531 = vmatprep.subr.bf16.mxu0 0
        %532 = vmatpush1.bf16.msra.mxu0 %v514
        %533 = vmatprep.subr.bf16.mxu0 0
        %534 = vmatpush1.bf16.msra.mxu0 %v515
        %535 = vmatprep.subr.bf16.mxu0 0
        %536 = vmatpush1.bf16.msra.mxu0 %v516
        %537 = vmatprep.subr.bf16.mxu0 0
        %538 = vmatpush1.bf16.msra.mxu0 %v517
        %539 = vmatprep.subr.bf16.mxu0 0
        %540 = vmatpush1.bf16.msra.mxu0 %v518
        %541 = vmatprep.subr.bf16.mxu0 0
        %542 = vmatpush1.bf16.msra.mxu0 %v519
        %543 = vmatprep.subr.bf16.mxu0 0
        %544 = vmatpush1.bf16.msra.mxu0 %v520
        %545 = vmatprep.subr.bf16.mxu0 0
        %546 = vmatpush1.bf16.msra.mxu0 0
        %547 = vmatprep.subr.bf16.mxu0 0
        %548 = vmatpush1.bf16.msra.mxu0 0
        %549 = vmatprep.subr.bf16.mxu0 0
        %550 = vmatpush1.bf16.msra.mxu0 0
        %551 = vmatprep.subr.bf16.mxu0 0
        %552 = vmatpush1.bf16.msra.mxu0 0
        %553 = vmatprep.subr.bf16.mxu0 0
        %554 = vmatpush1.bf16.msra.mxu0 0
        %555 = vmatprep.subr.bf16.mxu0 0
        %556 = vmatpush1.bf16.msra.mxu0 0
        %557 = vmatprep.subr.bf16.mxu0 0
        %558 = vmatpush1.bf16.msra.mxu0 0
        %559 = vmatprep.subr.bf16.mxu0 0
        %560 = vmatpush1.bf16.msra.mxu0 0
        %561 = vmatprep.mubr.bf16.mxu0 0
        %562 = vmatmul.mubr.bf16.gmra.mrb[0].mxu0 %v464
        %v563 = vpop.f32.mrb[0].mxu0
        %v564 = vadd.f32 0.0, %v563
        %v565 = vpop.f32.mrb[0].mxu0
        %v566 = vpop.f32.mrb[0].mxu0
        %v567 = vpop.f32.mrb[0].mxu0
        %568 = vdwg.mxu0
        %v569 = vadd.f32 %v463, %v564
        %570 = vst [vmem:[%s329] sm:$0xff] %v569
        %s571 = sand.u32 %s184, 1
        %s572 = scalar_lea.sflag [#allocation4], %s571
        %s573 = sand.u32 %s184, 1
        %s574 = smul.addr %s573, 8
        %s575 = scalar_lea.vmem [#allocation8], %s574
        // Predicated region
        $region57: #{tpu_custom_call.1} parent=39 // pred_check
          %p576 = pneg %p194
        $region58: #{tpu_custom_call.1} parent=39 // pred_check_branch
          %578 = sbr.rel (%p576) target = $region60
        $region59: #{tpu_custom_call.1} parent=39 // pred_region
          %s580 = ssub.s32 128, 128
          %581 = vsyncadd %s572, %s580
          %s582 = sadd.s32 %s29, %s28
          %s583 = smul.addr %s582, 128
          %s584 = scalar_lea.hbm %s5, %s583
          %s586 = sshll.u32 %s575, 4
          %s587 = int_to_ptr.vmem [resolvable:$true] %s586
          %589 = dma.vmem_to_hbm [thread:$0]  %s587, 128, %s584, %s572
        $region60: #{tpu_custom_call.1} parent=39 // pred_fallthru
          _
      $region40: #{tpu_custom_call.1} parent=5 // pred_fallthru
        _
      %p590 = scmp.le.s32.totalorder 2, %s18
      // Predicated region
      $region61: #{tpu_custom_call.1} parent=5 // pred_check
        %p591 = pneg %p590
      $region62: #{tpu_custom_call.1} parent=5 // pred_check_branch
        %593 = sbr.rel (%p591) target = $region64
      $region63: #{tpu_custom_call.1} parent=5 // pred_region
        %s594 = ssub.s32 %s18, 2
        // Predicated region
        $region65: #{tpu_custom_call.1} parent=63 // pred_check
          %p595 = pneg %p200
        $region66: #{tpu_custom_call.1} parent=63 // pred_check_branch
          %597 = sbr.rel (%p595) target = $region68
        $region67: #{tpu_custom_call.1} parent=63 // pred_region
          %s598 = sand.u32 %s185, 1
          %s599 = scalar_lea.sflag [#allocation4], %s598
          %s600 = sand.u32 %s185, 1
          %s601 = smul.addr %s600, 8
          %s602 = scalar_lea.vmem [#allocation8], %s601
          %603 = dma.done %s599, 128
        $region68: #{tpu_custom_call.1} parent=63 // pred_fallthru
          _
      $region64: #{tpu_custom_call.1} parent=5 // pred_fallthru
        _
    $region6: #{tpu_custom_call.1} parent=1 // loop_footer
      %s22 = sadd.s32 1, %s18
    $region7: #{tpu_custom_call.1} parent=1 // loop_footer_branch
      %17 = sbr.rel target = $region3
    $region8: #{tpu_custom_call.1} parent=1 // loop_exit
      _
    %604 = vsyncpa [#allocation3], 1
    %s605 = scalar_lea.sflag [#allocation3], 1
    %606 = vsyncpa %s605, 1
    %607 = vsyncpa [#allocation6], 1
    %608 = vsyncpa [#allocation4], 1
    %s609 = scalar_lea.sflag [#allocation4], 1
    %610 = vsyncpa %s609, 1

</llo_original>
